<compile_context>
chip_gen: v5e
topology: v5e:2x2
jax: 0.10.0
libtpu: 0.0.40
codegen_flags: <defaults>
</compile_context>

<pallas_src>
import functools

import jax
import jax.numpy as jnp
from jax.experimental import pallas as pl
from jax.experimental.pallas import tpu as pltpu


def _round_up(a, b):
    return ((a + b - 1) // b) * b


# ---------------------------------------------------------------------------
# Kernel: row softmax (lane-packed) + block-diagonal matmul, denom via MXU
# ---------------------------------------------------------------------------
def _channel_kernel(x_ref, rhs_ref, o_ref):
    # x_ref  : (tm, L)   packed rows; each 128-lane row holds `pack` logical
    #          rows of width D side by side (lane-dense when 128 % D == 0).
    # rhs_ref: (L, 2L)   [CM_blockdiag | Ones_blockdiag], bf16, resident across
    #          all grid steps (index_map always (0, 0)).
    # o_ref  : (tm, L)
    L = o_ref.shape[-1]

    x = x_ref[...].astype(jnp.float32)

    # Whole-row max is a valid (constant per group) shift for the per-group
    # softmax.  NOTE: if a 32-lane group sat ~80+ logits below the packed-row
    # max its exps would all underflow (0/0); fine for typical activations.
    m = jnp.max(x, axis=-1, keepdims=True)
    ex = jnp.exp(x - m)

    # One MXU matmul gives both the numerator Y = ex @ CM_blockdiag and the
    # per-group denominators (ex @ Ones_blockdiag broadcasts each group sum to
    # that group's lanes).
    yd = jnp.dot(ex.astype(jnp.bfloat16), rhs_ref[...],
                 preferred_element_type=jnp.float32)
    y = yd[:, :L]
    denom = yd[:, L:]

    o_ref[...] = (y * pl.reciprocal(denom, approx=True)).astype(o_ref.dtype)


# ---------------------------------------------------------------------------
# Wrapper
# ---------------------------------------------------------------------------
def channel_forward(x, weight, *, tm=2048):
    """x: (B, S, D), weight: (D, D) -> (B, S, D).  Matches Channel.forward."""
    B, S, D = x.shape
    assert weight.shape == (D, D)
    M = B * S

    # Lane packing factor: how many width-D logical rows fit in 128 lanes.
    pack = 128 // D if (D < 128 and 128 % D == 0) else 1
    L = pack * D

    # channel_matrix = softmax(weight, dim=1) -- tiny (D, D), exact, plain XLA.
    cm = jax.nn.softmax(weight.astype(jnp.float32), axis=1)
    if pack > 1:
        eye = jnp.eye(pack, dtype=jnp.float32)
        cm_bd = jnp.kron(eye, cm)                                  # (L, L)
        ones_bd = jnp.kron(eye, jnp.ones((D, D), jnp.float32))     # (L, L)
    else:
        cm_bd = cm
        ones_bd = jnp.ones((D, D), jnp.float32)
    rhs = jnp.concatenate([cm_bd, ones_bd], axis=1).astype(jnp.bfloat16)  # (L, 2L)

    # Pack logical rows into 128-lane rows; pad at most pack-1 rows.
    x2 = x.reshape(M, D)
    rem = M % pack
    if rem:
        x2 = jnp.pad(x2, ((0, pack - rem), (0, 0)))
    R = x2.shape[0] // pack
    xp = x2.reshape(R, L)

    # Tile size: multiple of 8, large (default up to 2048), aim for >= 4 grid
    # steps so the double-buffered pipeline can hide the DMA.  Ragged last
    # block handled by Pallas (rows are independent).
    if R <= 8:
        tm_eff = R                      # block == full array dim (allowed)
    else:
        tm_eff = max(8, min(tm, _round_up(-(-R // 4), 8)))
    grid = pl.cdiv(R, tm_eff)

    out = pl.pallas_call(
        _channel_kernel,
        out_shape=jax.ShapeDtypeStruct((R, L), x.dtype),
        grid_spec=pltpu.PrefetchScalarGridSpec(
            num_scalar_prefetch=0,
            grid=(grid,),
            in_specs=[
                pl.BlockSpec((tm_eff, L), lambda i: (i, 0)),     # packed x rows
                pl.BlockSpec((L, 2 * L), lambda i: (0, 0)),      # resident RHS
            ],
            out_specs=pl.BlockSpec((tm_eff, L), lambda i: (i, 0)),
        ),
        compiler_params=pltpu.CompilerParams(
            dimension_semantics=("parallel",),
            vmem_limit_bytes=32 * 1024 * 1024,
        ),
    )(xp, rhs)

    out = out.reshape(R * pack, D)[:M]
    return out.reshape(B, S, D)


def _reference(x, weight):
    channel_matrix = jax.nn.softmax(weight, axis=1)
    prob_x = jax.nn.softmax(x, axis=-1)
    return jnp.matmul(prob_x, channel_matrix)


if __name__ == "__main__":
    # Small shapes consistent with the module: input_dim D=32, batch=2, seq=8.
    B, S, D = 2, 8, 32

    key = jax.random.PRNGKey(0)
    x = jax.random.normal(key, (B, S, D), dtype=jnp.float32)

    # Deterministic parameter init mirroring Channel.reset_parameters():
    #   weight = ones(D, D); weight[:, 0] = 0   (bias=False; bias unused in forward)
    weight = jnp.ones((D, D), dtype=jnp.float32)
    weight = weight.at[:, 0].set(0.0)

    out = jax.block_until_ready(channel_forward(x, weight))

    ref = _reference(x, weight)
    assert out.shape == (B, S, D)
    # Tolerance accounts for bf16 MXU inputs and pl.reciprocal(approx=True).
    assert jnp.allclose(out, ref, atol=2e-3, rtol=2e-3), "mismatch vs reference"

    print("KERNEL_OK")
</pallas_src>

<mosaic_0001>
module attributes {stable_mosaic.version = 11 : i64} {
  func.func @_channel_kernel(%arg0: i32, %arg1: memref<4x128xf32, #tpu.memory_space<vmem>>, %arg2: memref<128x256xbf16, #tpu.memory_space<vmem>>, %arg3: memref<4x128xf32, #tpu.memory_space<vmem>>) attributes {dimension_semantics = [#tpu.dimension_semantics<parallel>], iteration_bounds = array<i64: 1>, scalar_prefetch = 0 : i64, scratch_operands = 0 : i64, tpu.core_type = #tpu.core_type<tc>, window_params = [{transform_indices = @transform_0, window_bounds = array<i64: 4, 128>}, {pipeline_mode = #tpu.pipeline_mode<synchronous>, transform_indices = @transform_1, window_bounds = array<i64: 128, 256>}, {transform_indices = @transform_2, window_bounds = array<i64: 4, 128>}]} {
    %c0 = arith.constant 0 : index
    %c0_0 = arith.constant 0 : index
    %0 = vector.load %arg1[%c0, %c0_0] : memref<4x128xf32, #tpu.memory_space<vmem>>, vector<4x128xf32>
    %cst = arith.constant dense<0xFF800000> : vector<4xf32>
    %1 = vector.multi_reduction <maximumf>, %0, %cst [1] : vector<4x128xf32> to vector<4xf32>
    %2 = vector.shape_cast %1 : vector<4xf32> to vector<4x1xf32>
    %3 = vector.broadcast %2 : vector<4x1xf32> to vector<4x128xf32>
    %4 = arith.subf %0, %3 : vector<4x128xf32>
    %5 = math.exp %4 : vector<4x128xf32>
    %6 = arith.truncf %5 : vector<4x128xf32> to vector<4x128xbf16>
    %c0_1 = arith.constant 0 : index
    %c0_2 = arith.constant 0 : index
    %7 = vector.load %arg2[%c0_1, %c0_2] : memref<128x256xbf16, #tpu.memory_space<vmem>>, vector<128x256xbf16>
    %cst_3 = arith.constant dense<0.000000e+00> : vector<4x256xf32>
    %8 = tpu.matmul %6, %7, %cst_3 {dimension_numbers = #tpu.dot_dimension_numbers<[1], [0], [0], [1], [0, 0, 1, 1], [], []>} : vector<4x128xbf16>, vector<128x256xbf16>, vector<4x256xf32> -> vector<4x256xf32>
    %9 = vector.extract_strided_slice %8 {offsets = [0, 0], sizes = [4, 128], strides = [1, 1]} : vector<4x256xf32> to vector<4x128xf32>
    %10 = vector.extract_strided_slice %8 {offsets = [0, 128], sizes = [4, 128], strides = [1, 1]} : vector<4x256xf32> to vector<4x128xf32>
    %11 = tpu.reciprocal %10 {approx = true} : vector<4x128xf32> -> vector<4x128xf32>
    %12 = arith.mulf %9, %11 : vector<4x128xf32>
    %c0_4 = arith.constant 0 : index
    %c0_5 = arith.constant 0 : index
    %13 = vector.load %arg3[%c0_4, %c0_5] : memref<4x128xf32, #tpu.memory_space<vmem>>, vector<4x128xf32>
    tpu.vector_store %arg3[%c0_4, %c0_5], %12 {strides = array<i32>} : memref<4x128xf32, #tpu.memory_space<vmem>>, vector<4x128xf32>,
    return
  }
  func.func @transform_0(%arg0: i32) -> (i32, i32) {
    %c0_i32 = arith.constant 0 : i32
    %c0_i32_0 = arith.constant 0 : i32
    return %arg0, %c0_i32 : i32, i32
  }
  func.func @transform_1(%arg0: i32) -> (i32, i32) {
    %c0_i32 = arith.constant 0 : i32
    %c0_i32_0 = arith.constant 0 : i32
    %c0_i32_1 = arith.constant 0 : i32
    return %c0_i32, %c0_i32_0 : i32, i32
  }
  func.func @transform_2(%arg0: i32) -> (i32, i32) {
    %c0_i32 = arith.constant 0 : i32
    %c0_i32_0 = arith.constant 0 : i32
    return %arg0, %c0_i32 : i32, i32
  }
}

</mosaic_0001>

<llo_original>
// kernel: tpu_custom_call.1
$region0: #{tpu_custom_call.1}
  #allocation0 [shape = 'u32[]', space=smem, size = 0x4, offset = 0x4, fixed_abs, tag = 'smem constant byte address 0x4 - core index']
  #allocation1 [shape = 'u32[72,128]{1,0:T(1,128)}', space=vmem, size = 0x9000, scoped, tag = 'internal scratch']
  %s0 = inlined_call_operand.hbm [shape: f32[4,128], index: 0, kind: input, shape index: {}]
  %s1 = inlined_call_operand.hbm [shape: bf16[128,256], index: 1, kind: input, shape index: {}]
  %s2 = inlined_call_operand.hbm [shape: f32[4,128], index: 2, kind: output, shape index: {}]
  %s3 = sld [smem:[#allocation0]]
  $region26: #{tpu_custom_call.1} parent=0
    _
  %s5 = ssub.s32 1, %s3
  %s6 = scalar_select 0, %s5, %s3
  $region1: #{tpu_custom_call.1} parent=0
    #allocation2 [shape = 'u8[2048]{0}', space=vmem, size = 0x800, scoped, tag = 'input window, operand 0, single buffered']
    #allocation3 [shape = 's32[1]{0}', space=sflag, size = 0x4, scoped, tag = 'scoped memory for tpu_custom_call.1']
    #allocation4 [shape = 's32[1]{0}', space=sflag, size = 0x4, scoped, tag = 'scoped memory for tpu_custom_call.1']
    #allocation5 [shape = 'u8[65536]{0}', space=vmem, size = 0x10000, scoped, tag = 'input window, operand 1, single buffered']
    #allocation6 [shape = 's32[1]{0}', space=sflag, size = 0x4, scoped, tag = 'scoped memory for tpu_custom_call.1']
    #allocation7 [shape = 'u8[2048]{0}', space=vmem, size = 0x800, scoped, tag = 'output window, operand 0, single buffered']
    %7 = vsyncpa [#allocation3], 0
    %8 = vsyncpa [#allocation6], 0
    %9 = vsyncpa [#allocation4], 0
    // Predicated region
    $region2: #{tpu_custom_call.1} parent=1 // pred_check
      _
    $region3: #{tpu_custom_call.1} parent=1 // pred_check_branch
      %11 = sbr.rel (0) target = $region5
    $region4: #{tpu_custom_call.1} parent=1 // pred_region
      %13 = vsyncadd [#allocation3], 0
      %s15 = sshll.u32 %s0, 4
      %s16 = int_to_ptr.hbm [resolvable:$true] %s15
      %s17 = sshll.u32 [#allocation2], 4
      %s18 = int_to_ptr.vmem [resolvable:$true] %s17
      %20 = dma.hbm_to_vmem [thread:$0]  %s16, 64, %s18, [#allocation3]
    $region5: #{tpu_custom_call.1} parent=1 // pred_fallthru
      _
    // Predicated region
    $region6: #{tpu_custom_call.1} parent=1 // pred_check
      _
    $region7: #{tpu_custom_call.1} parent=1 // pred_check_branch
      %22 = sbr.rel (0) target = $region9
    $region8: #{tpu_custom_call.1} parent=1 // pred_region
      %24 = vsyncadd [#allocation6], 0
      %s25 = sshll.u32 %s1, 4
      %s26 = int_to_ptr.hbm [resolvable:$true] %s25
      %s27 = sshll.u32 [#allocation5], 4
      %s28 = int_to_ptr.vmem [resolvable:$true] %s27
      %33 = dma.hbm_to_vmem [thread:$0]  %s26, 2048, %s28, [#allocation6], 128, 128, 8
    $region9: #{tpu_custom_call.1} parent=1 // pred_fallthru
      _
    // Predicated region
    $region10: #{tpu_custom_call.1} parent=1 // pred_check
      _
    $region11: #{tpu_custom_call.1} parent=1 // pred_check_branch
      %35 = sbr.rel (0) target = $region13
    $region12: #{tpu_custom_call.1} parent=1 // pred_region
      %37 = dma.done [#allocation3], 64
    $region13: #{tpu_custom_call.1} parent=1 // pred_fallthru
      _
    // Predicated region
    $region14: #{tpu_custom_call.1} parent=1 // pred_check
      _
    $region15: #{tpu_custom_call.1} parent=1 // pred_check_branch
      %39 = sbr.rel (0) target = $region17
    $region16: #{tpu_custom_call.1} parent=1 // pred_region
      %41 = dma.done [#allocation6], 2048
    $region17: #{tpu_custom_call.1} parent=1 // pred_fallthru
      _
    %v42 = vld [vmem:[#allocation2] sm:$0xf]
    %vm43 = vcmask 1043456
    %v44 = vsel %vm43, %v42, -inf
    %45 = vmax.xlane.f32.xlu0 %v44
    %v46 = vpop.xlane.xlu0 %45
    %v47 = vsub.f32 %v42, %v46
    %v48 = vmul.f32 %v47, 1.442695
    %v49 = vpow.pop %v48
    %v50 = vpack.c.bf16 %v49, %v49
    %v51 = vld [vmem:[#allocation5] sm:$0xff]
    %v52 = vld [vmem:[#allocation5 + $0x8] sm:$0xff]
    %v53 = vld [vmem:[#allocation5 + $0x10] sm:$0xff]
    %v54 = vld [vmem:[#allocation5 + $0x18] sm:$0xff]
    %v55 = vld [vmem:[#allocation5 + $0x20] sm:$0xff]
    %v56 = vld [vmem:[#allocation5 + $0x28] sm:$0xff]
    %v57 = vld [vmem:[#allocation5 + $0x30] sm:$0xff]
    %v58 = vld [vmem:[#allocation5 + $0x38] sm:$0xff]
    %v59 = vld [vmem:[#allocation5 + $0x40] sm:$0xff]
    %v60 = vld [vmem:[#allocation5 + $0x48] sm:$0xff]
    %v61 = vld [vmem:[#allocation5 + $0x50] sm:$0xff]
    %v62 = vld [vmem:[#allocation5 + $0x58] sm:$0xff]
    %v63 = vld [vmem:[#allocation5 + $0x60] sm:$0xff]
    %v64 = vld [vmem:[#allocation5 + $0x68] sm:$0xff]
    %v65 = vld [vmem:[#allocation5 + $0x70] sm:$0xff]
    %v66 = vld [vmem:[#allocation5 + $0x78] sm:$0xff]
    %v83 = vunpack.c.l.b16 %v51
    %v84 = vunpack.c.h.b16 %v51
    %v85 = vunpack.c.l.b16 %v52
    %v86 = vunpack.c.h.b16 %v52
    %v87 = vunpack.c.l.b16 %v53
    %v88 = vunpack.c.h.b16 %v53
    %v89 = vunpack.c.l.b16 %v54
    %v90 = vunpack.c.h.b16 %v54
    %v91 = vunpack.c.l.b16 %v55
    %v92 = vunpack.c.h.b16 %v55
    %v93 = vunpack.c.l.b16 %v56
    %v94 = vunpack.c.h.b16 %v56
    %v95 = vunpack.c.l.b16 %v57
    %v96 = vunpack.c.h.b16 %v57
    %v97 = vunpack.c.l.b16 %v58
    %v98 = vunpack.c.h.b16 %v58
    %v99 = vunpack.c.l.b16 %v59
    %v100 = vunpack.c.h.b16 %v59
    %v101 = vunpack.c.l.b16 %v60
    %v102 = vunpack.c.h.b16 %v60
    %v103 = vunpack.c.l.b16 %v61
    %v104 = vunpack.c.h.b16 %v61
    %v105 = vunpack.c.l.b16 %v62
    %v106 = vunpack.c.h.b16 %v62
    %v107 = vunpack.c.l.b16 %v63
    %v108 = vunpack.c.h.b16 %v63
    %v109 = vunpack.c.l.b16 %v64
    %v110 = vunpack.c.h.b16 %v64
    %v111 = vunpack.c.l.b16 %v65
    %v112 = vunpack.c.h.b16 %v65
    %v113 = vunpack.c.l.b16 %v66
    %v114 = vunpack.c.h.b16 %v66
    %v115 = vpack.c.b16 %v85, %v83
    %v116 = vpack.c.b16 %v86, %v84
    %v117 = vpack.c.b16 %v89, %v87
    %v118 = vpack.c.b16 %v90, %v88
    %v119 = vpack.c.b16 %v93, %v91
    %v120 = vpack.c.b16 %v94, %v92
    %v121 = vpack.c.b16 %v97, %v95
    %v122 = vpack.c.b16 %v98, %v96
    %v123 = vpack.c.b16 %v101, %v99
    %v124 = vpack.c.b16 %v102, %v100
    %v125 = vpack.c.b16 %v105, %v103
    %v126 = vpack.c.b16 %v106, %v104
    %v127 = vpack.c.b16 %v109, %v107
    %v128 = vpack.c.b16 %v110, %v108
    %v129 = vpack.c.b16 %v113, %v111
    %v130 = vpack.c.b16 %v114, %v112
    %147 = vmatpush.bf16.msra.mxu0 %v129
    %148 = vmatpush.bf16.msra.mxu0 %v127
    %149 = vmatpush.bf16.msra.mxu0 %v125
    %150 = vmatpush.bf16.msra.mxu0 %v123
    %151 = vmatpush.bf16.msra.mxu0 %v121
    %152 = vmatpush.bf16.msra.mxu0 %v119
    %153 = vmatpush.bf16.msra.mxu0 %v117
    %154 = vmatpush.bf16.msra.mxu0 %v115
    %155 = vmatmul.bf16.gmra.mxu0 %v50
    %v156 = vpop.f32.mrf.mxu0
    %v157 = vadd.f32 0.0, %v156
    %v158 = vpop.f32.mrf.mxu0
    %159 = vdwg.mxu0
    %160 = vmatpush.bf16.msra.mxu0 %v130
    %161 = vmatpush.bf16.msra.mxu0 %v128
    %162 = vmatpush.bf16.msra.mxu0 %v126
    %163 = vmatpush.bf16.msra.mxu0 %v124
    %164 = vmatpush.bf16.msra.mxu0 %v122
    %165 = vmatpush.bf16.msra.mxu0 %v120
    %166 = vmatpush.bf16.msra.mxu0 %v118
    %167 = vmatpush.bf16.msra.mxu0 %v116
    %168 = vmatmul.bf16.gmra.mxu0 %v50
    %v169 = vpop.f32.mrf.mxu0
    %v170 = vadd.f32 0.0, %v169
    %v171 = vpop.f32.mrf.mxu0
    %172 = vdwg.mxu0
    %v173 = vrcp.pop %v170
    %v174 = vmul.f32 %v157, %v173
    %175 = vst [vmem:[#allocation7] sm:$0xf] %v174
    // Predicated region
    $region18: #{tpu_custom_call.1} parent=1 // pred_check
      _
    $region19: #{tpu_custom_call.1} parent=1 // pred_check_branch
      %177 = sbr.rel (0) target = $region21
    $region20: #{tpu_custom_call.1} parent=1 // pred_region
      %179 = vsyncadd [#allocation4], 0
      %s181 = sshll.u32 [#allocation7], 4
      %s182 = int_to_ptr.vmem [resolvable:$true] %s181
      %s183 = sshll.u32 %s2, 4
      %s184 = int_to_ptr.hbm [resolvable:$true] %s183
      %186 = dma.vmem_to_hbm [thread:$0]  %s182, 64, %s184, [#allocation4]
    $region21: #{tpu_custom_call.1} parent=1 // pred_fallthru
      _
    // Predicated region
    $region22: #{tpu_custom_call.1} parent=1 // pred_check
      _
    $region23: #{tpu_custom_call.1} parent=1 // pred_check_branch
      %188 = sbr.rel (0) target = $region25
    $region24: #{tpu_custom_call.1} parent=1 // pred_region
      %190 = dma.done [#allocation4], 64
    $region25: #{tpu_custom_call.1} parent=1 // pred_fallthru
      _
    %191 = vsyncpa [#allocation3], 1
    %192 = vsyncpa [#allocation6], 1
    %193 = vsyncpa [#allocation4], 1

</llo_original>
